<compile_context>
chip_gen: v7x
topology: tpu7x:2x2x1
jax: 0.10.0
libtpu: 0.0.40
codegen_flags: <defaults>
</compile_context>

<pallas_src>
import functools
import math

import jax
import jax.numpy as jnp
from jax.experimental import pallas as pl
from jax.experimental.pallas import tpu as pltpu


def _weighted_mse_kernel(x_ref, t_ref, o_ref, *, weight_factor, cutoff, w):
    x = x_ref[...]
    t = t_ref[...]
    diff = x - t
    sq = diff * diff
    # Hoisted weight mask: a single (1, lane_w) row.  lane_w is always a
    # multiple of W, so (lane index % W) is the true W coordinate for every
    # (possibly folded / flattened) row.  Broadcasts across sublanes below.
    lane_w = x_ref.shape[-1]
    col = jax.lax.broadcasted_iota(jnp.int32, (1, lane_w), 1)
    scale = jnp.where(
        col % w < cutoff,
        jnp.asarray(weight_factor, dtype=sq.dtype),
        jnp.asarray(1.0, dtype=sq.dtype),
    )
    o_ref[...] = sq * scale


def _sublane_multiple(dtype):
    # Packed-layout sublane tile: 8 for 4-byte, 16 for 2-byte, 32 for 1-byte.
    itemsize = jnp.dtype(dtype).itemsize
    return max(8, 32 // max(itemsize, 1))


def _target_tile_bytes():
    # ~4 MiB tiles on v6e/v7x (24 MiB resident with double buffering, under
    # the 32 MiB scoped default); ~2 MiB on v5e / unknown (16 MiB scoped).
    try:
        kind = jax.devices()[0].device_kind.lower()
    except Exception:
        kind = ""
    if "v6" in kind or "v7" in kind or "7x" in kind:
        return 4 << 20
    return 2 << 20


def _choose_lane_width(total, w, sublane_mult, max_lane=1024):
    """Pick a lane width that is a multiple of lcm(W, 128).

    Prefer the widest candidate (<= max_lane) for which no padding is needed;
    otherwise return the widest candidate and signal that padding is required.
    """
    base = (w * 128) // math.gcd(w, 128)  # lcm(W, 128)
    cands = []
    lw = base
    while lw <= max_lane:
        cands.append(lw)
        lw *= 2
    if not cands:
        cands = [base]  # very large W: base itself is lane-dense (128 | base)
    for cand in reversed(cands):
        if total % (cand * sublane_mult) == 0:
            return cand, False
    return cands[-1], True


def custom_mse_loss(inp, target, weight_factor=2.0, cutoff=20):
    """Elementwise weighted MSE; returns an array of the same NCHW shape."""
    assert inp.shape == target.shape
    assert inp.dtype == target.dtype
    n, c, h, w = inp.shape
    total = n * c * h * w

    dtype = inp.dtype
    bytes_per_el = jnp.dtype(dtype).itemsize
    sublane_mult = _sublane_multiple(dtype)

    lane_w, _needs_pad = _choose_lane_width(total, w, sublane_mult)

    # Flatten (pure reshape, C-order) and pad only when the element count does
    # not divide a (sublane_mult x lane_w) slab.  Padded tail is sliced off
    # after the kernel, so its (scaled) zero values never reach the caller.
    x_flat = inp.reshape(-1)
    t_flat = target.reshape(-1)
    chunk = lane_w * sublane_mult
    padded_total = ((total + chunk - 1) // chunk) * chunk
    if padded_total != total:
        pad = padded_total - total
        x_flat = jnp.pad(x_flat, (0, pad))
        t_flat = jnp.pad(t_flat, (0, pad))

    rows = padded_total // lane_w  # always a multiple of sublane_mult
    x2d = x_flat.reshape(rows, lane_w)
    t2d = t_flat.reshape(rows, lane_w)

    # Row-tile sizing: generation-dependent byte target, sublane-aligned.
    tile_rows = _target_tile_bytes() // (lane_w * bytes_per_el)
    tile_rows = max(sublane_mult, (tile_rows // sublane_mult) * sublane_mult)
    if tile_rows >= rows:
        if rows >= 2 * sublane_mult:
            # Keep >= 2 tiles so the "parallel" grid axis can shard across
            # both TensorCores on v7x (negligible cost elsewhere).
            half = (rows + 1) // 2
            tile_rows = ((half + sublane_mult - 1) // sublane_mult) * sublane_mult
        else:
            tile_rows = rows
    grid = (pl.cdiv(rows, tile_rows),)

    kernel = functools.partial(
        _weighted_mse_kernel,
        weight_factor=float(weight_factor),
        cutoff=int(cutoff),
        w=int(w),
    )

    out2d = pl.pallas_call(
        kernel,
        out_shape=jax.ShapeDtypeStruct((rows, lane_w), dtype),
        grid=grid,
        in_specs=[
            pl.BlockSpec((tile_rows, lane_w), lambda i: (i, 0)),
            pl.BlockSpec((tile_rows, lane_w), lambda i: (i, 0)),
        ],
        out_specs=pl.BlockSpec((tile_rows, lane_w), lambda i: (i, 0)),
        compiler_params=pltpu.CompilerParams(
            dimension_semantics=("parallel",),
        ),
    )(x2d, t2d)

    out_flat = out2d.reshape(-1)
    if padded_total != total:
        out_flat = out_flat[:total]
    return out_flat.reshape(n, c, h, w)


def _reference(inp, target, weight_factor=2.0, cutoff=20):
    mse = (inp - target) ** 2
    mask = jnp.ones_like(target)
    mask = mask.at[:, :, :, :cutoff].multiply(weight_factor)
    return mse * mask


if __name__ == "__main__":
    key = jax.random.PRNGKey(0)
    k1, k2, k3, k4 = jax.random.split(key, 4)

    # Main check: NCHW with W=32 (the ':20' weighted region is a proper subset).
    x = jax.random.normal(k1, (2, 4, 16, 32), dtype=jnp.float32)
    t = jax.random.normal(k2, (2, 4, 16, 32), dtype=jnp.float32)
    out = custom_mse_loss(x, t, weight_factor=2.0)
    out = jax.block_until_ready(out)
    ref = _reference(x, t, weight_factor=2.0)
    assert out.shape == x.shape
    assert jnp.allclose(out, ref, atol=1e-6, rtol=1e-6)

    # Secondary check: non-power-of-two W and a shape that exercises the
    # pad-and-slice path (no narrow-lane fallback anymore).
    x2 = jax.random.normal(k3, (2, 3, 5, 24), dtype=jnp.float32)
    t2 = jax.random.normal(k4, (2, 3, 5, 24), dtype=jnp.float32)
    out2 = jax.block_until_ready(custom_mse_loss(x2, t2, weight_factor=2.0))
    ref2 = _reference(x2, t2, weight_factor=2.0)
    assert out2.shape == x2.shape
    assert jnp.allclose(out2, ref2, atol=1e-6, rtol=1e-6)

    # Tertiary check: bf16 input exercises dtype-aware sublane rounding.
    xb = x.astype(jnp.bfloat16)
    tb = t.astype(jnp.bfloat16)
    outb = jax.block_until_ready(custom_mse_loss(xb, tb, weight_factor=2.0))
    refb = _reference(xb, tb, weight_factor=2.0)
    assert outb.shape == xb.shape
    assert jnp.allclose(
        outb.astype(jnp.float32), refb.astype(jnp.float32), atol=1e-2, rtol=1e-2
    )

    print("KERNEL_OK")
</pallas_src>

<mosaic_0001>
module attributes {stable_mosaic.version = 11 : i64} {
  func.func @_weighted_mse_kernel(%arg0: i32, %arg1: memref<8x512xf32, #tpu.memory_space<vmem>>, %arg2: memref<8x512xf32, #tpu.memory_space<vmem>>, %arg3: memref<8x512xf32, #tpu.memory_space<vmem>>) attributes {dimension_semantics = [#tpu.dimension_semantics<parallel>], iteration_bounds = array<i64: 1>, scalar_prefetch = 0 : i64, scratch_operands = 0 : i64, tpu.core_type = #tpu.core_type<tc>, window_params = [{transform_indices = @transform_0, window_bounds = array<i64: 8, 512>}, {transform_indices = @transform_1, window_bounds = array<i64: 8, 512>}, {transform_indices = @transform_2, window_bounds = array<i64: 8, 512>}]} {
    %c0 = arith.constant 0 : index
    %c0_0 = arith.constant 0 : index
    %0 = vector.load %arg1[%c0, %c0_0] : memref<8x512xf32, #tpu.memory_space<vmem>>, vector<8x512xf32>
    %c0_1 = arith.constant 0 : index
    %c0_2 = arith.constant 0 : index
    %1 = vector.load %arg2[%c0_1, %c0_2] : memref<8x512xf32, #tpu.memory_space<vmem>>, vector<8x512xf32>
    %2 = arith.subf %0, %1 : vector<8x512xf32>
    %3 = arith.mulf %2, %2 : vector<8x512xf32>
    %4 = tpu.iota {dimensions = array<i32: 1>} : vector<1x512xi32>
    %c32_i32 = arith.constant 32 : i32
    %c0_i32 = arith.constant 0 : i32
    %5 = arith.cmpi eq, %c32_i32, %c0_i32 : i32
    %c1_i32 = arith.constant 1 : i32
    %6 = arith.select %5, %c1_i32, %c32_i32 : i32
    %7 = vector.broadcast %6 : i32 to vector<1x512xi32>
    %8 = arith.remsi %4, %7 : vector<1x512xi32>
    %c0_i32_3 = arith.constant 0 : i32
    %9 = vector.broadcast %c0_i32_3 : i32 to vector<1x512xi32>
    %10 = arith.cmpi ne, %8, %9 : vector<1x512xi32>
    %c0_i32_4 = arith.constant 0 : i32
    %11 = vector.broadcast %c0_i32_4 : i32 to vector<1x512xi32>
    %12 = arith.cmpi slt, %8, %11 : vector<1x512xi32>
    %c0_i32_5 = arith.constant 0 : i32
    %13 = arith.cmpi slt, %6, %c0_i32_5 : i32
    %14 = vector.broadcast %13 : i1 to vector<1x512xi1>
    %15 = vector.broadcast %14 : vector<1x512xi1> to vector<1x512xi1>
    %16 = arith.xori %12, %15 : vector<1x512xi1>
    %17 = arith.andi %16, %10 : vector<1x512xi1>
    %18 = vector.broadcast %6 : i32 to vector<1x512xi32>
    %19 = arith.addi %8, %18 : vector<1x512xi32>
    %20 = arith.select %17, %19, %8 : vector<1x512xi1>, vector<1x512xi32>
    %c20_i32 = arith.constant 20 : i32
    %21 = vector.broadcast %c20_i32 : i32 to vector<1x512xi32>
    %22 = arith.cmpi slt, %20, %21 : vector<1x512xi32>
    %cst = arith.constant 2.000000e+00 : f32
    %cst_6 = arith.constant 1.000000e+00 : f32
    %23 = vector.broadcast %cst : f32 to vector<1x512xf32>
    %24 = vector.broadcast %cst_6 : f32 to vector<1x512xf32>
    %25 = arith.select %22, %23, %24 : vector<1x512xi1>, vector<1x512xf32>
    %26 = vector.broadcast %25 : vector<1x512xf32> to vector<8x512xf32>
    %27 = arith.mulf %3, %26 : vector<8x512xf32>
    %c0_7 = arith.constant 0 : index
    %c0_8 = arith.constant 0 : index
    %28 = vector.load %arg3[%c0_7, %c0_8] : memref<8x512xf32, #tpu.memory_space<vmem>>, vector<8x512xf32>
    tpu.vector_store %arg3[%c0_7, %c0_8], %27 {strides = array<i32>} : memref<8x512xf32, #tpu.memory_space<vmem>>, vector<8x512xf32>,
    return
  }
  func.func @transform_0(%arg0: i32) -> (i32, i32) {
    %c0_i32 = arith.constant 0 : i32
    %c0_i32_0 = arith.constant 0 : i32
    return %arg0, %c0_i32 : i32, i32
  }
  func.func @transform_1(%arg0: i32) -> (i32, i32) {
    %c0_i32 = arith.constant 0 : i32
    %c0_i32_0 = arith.constant 0 : i32
    return %arg0, %c0_i32 : i32, i32
  }
  func.func @transform_2(%arg0: i32) -> (i32, i32) {
    %c0_i32 = arith.constant 0 : i32
    %c0_i32_0 = arith.constant 0 : i32
    return %arg0, %c0_i32 : i32, i32
  }
}

</mosaic_0001>

<llo_original>
// kernel: tpu_custom_call.1
$region0: #{tpu_custom_call.1}
  #allocation0 [shape = 'u32[]', space=smem, size = 0x4, offset = 0x4, fixed_abs, tag = 'smem constant byte address 0x4 - core index']
  #allocation1 [shape = 'u32[144,128]{1,0:T(1,128)}', space=vmem, size = 0x12000, scoped, tag = 'internal scratch']
  %s0 = inlined_call_operand.hbm [shape: f32[8,512], index: 0, kind: input, shape index: {}]
  %s1 = inlined_call_operand.hbm [shape: f32[8,512], index: 1, kind: input, shape index: {}]
  %s2 = inlined_call_operand.hbm [shape: f32[8,512], index: 2, kind: output, shape index: {}]
  %s3 = sld [smem:[#allocation0]]
  $region26: #{tpu_custom_call.1} parent=0
    _
  %s5 = ssub.s32 1, %s3
  %s6 = scalar_select 0, %s5, %s3
  $region1: #{tpu_custom_call.1} parent=0
    #allocation2 [shape = 'u8[16384]{0}', space=vmem, size = 0x4000, scoped, tag = 'input window, operand 0, single buffered']
    #allocation3 [shape = 's32[1]{0}', space=sflag, size = 0x4, scoped, tag = 'scoped memory for tpu_custom_call.1']
    #allocation4 [shape = 's32[1]{0}', space=sflag, size = 0x4, scoped, tag = 'scoped memory for tpu_custom_call.1']
    #allocation5 [shape = 'u8[16384]{0}', space=vmem, size = 0x4000, scoped, tag = 'input window, operand 1, single buffered']
    #allocation6 [shape = 's32[1]{0}', space=sflag, size = 0x4, scoped, tag = 'scoped memory for tpu_custom_call.1']
    #allocation7 [shape = 'u8[16384]{0}', space=vmem, size = 0x4000, scoped, tag = 'output window, operand 0, single buffered']
    %7 = vsyncpa [#allocation3], 0
    %8 = vsyncpa [#allocation6], 0
    %9 = vsyncpa [#allocation4], 0
    // Predicated region
    $region2: #{tpu_custom_call.1} parent=1 // pred_check
      _
    $region3: #{tpu_custom_call.1} parent=1 // pred_check_branch
      %11 = sbr.rel (0) target = $region5
    $region4: #{tpu_custom_call.1} parent=1 // pred_region
      %s13 = ssub.s32 512, 512
      %14 = vsyncadd [#allocation3], %s13
      %s16 = sshll.u32 [#allocation2], 4
      %s17 = int_to_ptr.vmem [resolvable:$true] %s16
      %19 = dma.hbm_to_vmem [thread:$0]  %s0, 512, %s17, [#allocation3]
    $region5: #{tpu_custom_call.1} parent=1 // pred_fallthru
      _
    // Predicated region
    $region6: #{tpu_custom_call.1} parent=1 // pred_check
      _
    $region7: #{tpu_custom_call.1} parent=1 // pred_check_branch
      %21 = sbr.rel (0) target = $region9
    $region8: #{tpu_custom_call.1} parent=1 // pred_region
      %s23 = ssub.s32 512, 512
      %24 = vsyncadd [#allocation6], %s23
      %s26 = sshll.u32 [#allocation5], 4
      %s27 = int_to_ptr.vmem [resolvable:$true] %s26
      %29 = dma.hbm_to_vmem [thread:$0]  %s1, 512, %s27, [#allocation6]
    $region9: #{tpu_custom_call.1} parent=1 // pred_fallthru
      _
    // Predicated region
    $region10: #{tpu_custom_call.1} parent=1 // pred_check
      _
    $region11: #{tpu_custom_call.1} parent=1 // pred_check_branch
      %31 = sbr.rel (0) target = $region13
    $region12: #{tpu_custom_call.1} parent=1 // pred_region
      %32 = dma.done [#allocation3], 512
    $region13: #{tpu_custom_call.1} parent=1 // pred_fallthru
      _
    // Predicated region
    $region14: #{tpu_custom_call.1} parent=1 // pred_check
      _
    $region15: #{tpu_custom_call.1} parent=1 // pred_check_branch
      %34 = sbr.rel (0) target = $region17
    $region16: #{tpu_custom_call.1} parent=1 // pred_region
      %35 = dma.done [#allocation6], 512
    $region17: #{tpu_custom_call.1} parent=1 // pred_fallthru
      _
    %v36 = vld [vmem:[#allocation2] sm:$0xff]
    %v37 = vld [vmem:[#allocation2 + $0x8] sm:$0xff]
    %v38 = vld [vmem:[#allocation2 + $0x10] sm:$0xff]
    %v39 = vld [vmem:[#allocation2 + $0x18] sm:$0xff]
    %v40 = vld [vmem:[#allocation5] sm:$0xff]
    %v41 = vld [vmem:[#allocation5 + $0x8] sm:$0xff]
    %v42 = vld [vmem:[#allocation5 + $0x10] sm:$0xff]
    %v43 = vld [vmem:[#allocation5 + $0x18] sm:$0xff]
    %v44 = vsub.f32 %v36, %v40
    %v45 = vsub.f32 %v37, %v41
    %v46 = vsub.f32 %v38, %v42
    %v47 = vsub.f32 %v39, %v43
    %v48 = vmul.f32 %v44, %v44
    %v49 = vmul.f32 %v45, %v45
    %v50 = vmul.f32 %v46, %v46
    %v51 = vmul.f32 %v47, %v47
    %v52 = vlaneseq
    %v53 = vand.u32 %v52, 127
    %v54 = vadd.s32 %v53, 128
    %v55 = vadd.s32 %v53, 256
    %v56 = vadd.s32 %v53, 384
    %vm57 = vcmp.lt.s32.totalorder %v53, 0
    %v58 = vsub.s32 0, %v53
    %v59 = vsel %vm57, %v58, %v53
    %v60 = vshrl.u32 %v59, 5
    %v61 = vand.u32 %v59, 31
    %v62 = vsub.s32 0, %v61
    %v63 = vsel %vm57, %v62, %v61
    %vm64 = vcmp.lt.s32.totalorder %v54, 0
    %v65 = vsub.s32 0, %v54
    %v66 = vsel %vm64, %v65, %v54
    %v67 = vshrl.u32 %v66, 5
    %v68 = vand.u32 %v66, 31
    %v69 = vsub.s32 0, %v68
    %v70 = vsel %vm64, %v69, %v68
    %vm71 = vcmp.lt.s32.totalorder %v55, 0
    %v72 = vsub.s32 0, %v55
    %v73 = vsel %vm71, %v72, %v55
    %v74 = vshrl.u32 %v73, 5
    %v75 = vand.u32 %v73, 31
    %v76 = vsub.s32 0, %v75
    %v77 = vsel %vm71, %v76, %v75
    %vm78 = vcmp.lt.s32.totalorder %v56, 0
    %v79 = vsub.s32 0, %v56
    %v80 = vsel %vm78, %v79, %v56
    %v81 = vshrl.u32 %v80, 5
    %v82 = vand.u32 %v80, 31
    %v83 = vsub.s32 0, %v82
    %v84 = vsel %vm78, %v83, %v82
    %vm85 = vcmp.ne.s32.totalorder %v63, 0
    %vm86 = vcmp.ne.s32.totalorder %v70, 0
    %vm87 = vcmp.ne.s32.totalorder %v77, 0
    %vm88 = vcmp.ne.s32.totalorder %v84, 0
    %vm89 = vcmp.lt.s32.totalorder %v63, 0
    %vm90 = vcmp.lt.s32.totalorder %v70, 0
    %vm91 = vcmp.lt.s32.totalorder %v77, 0
    %vm92 = vcmp.lt.s32.totalorder %v84, 0
    %vm93 = vmand %vm89, %vm85
    %vm94 = vmand %vm90, %vm86
    %vm95 = vmand %vm91, %vm87
    %vm96 = vmand %vm92, %vm88
    %v97 = vadd.s32 %v63, 32
    %v98 = vadd.s32 %v70, 32
    %v99 = vadd.s32 %v77, 32
    %v100 = vadd.s32 %v84, 32
    %v101 = vsel %vm93, %v97, %v63
    %v102 = vsel %vm94, %v98, %v70
    %v103 = vsel %vm95, %v99, %v77
    %v104 = vsel %vm96, %v100, %v84
    %vm105 = vcmp.lt.s32.totalorder %v101, 20
    %vm106 = vcmp.lt.s32.totalorder %v102, 20
    %vm107 = vcmp.lt.s32.totalorder %v103, 20
    %vm108 = vcmp.lt.s32.totalorder %v104, 20
    %v109 = vsel %vm105, 2.0, 1.0
    %v110 = vsel %vm106, 2.0, 1.0
    %v111 = vsel %vm107, 2.0, 1.0
    %v112 = vsel %vm108, 2.0, 1.0
    %v113 = vmul.f32 %v48, %v109
    %v114 = vmul.f32 %v49, %v110
    %v115 = vmul.f32 %v50, %v111
    %v116 = vmul.f32 %v51, %v112
    %117 = vst [vmem:[#allocation7] sm:$0xff] %v113
    %118 = vst [vmem:[#allocation7 + $0x8] sm:$0xff] %v114
    %119 = vst [vmem:[#allocation7 + $0x10] sm:$0xff] %v115
    %120 = vst [vmem:[#allocation7 + $0x18] sm:$0xff] %v116
    // Predicated region
    $region18: #{tpu_custom_call.1} parent=1 // pred_check
      _
    $region19: #{tpu_custom_call.1} parent=1 // pred_check_branch
      %122 = sbr.rel (0) target = $region21
    $region20: #{tpu_custom_call.1} parent=1 // pred_region
      %s124 = ssub.s32 512, 512
      %125 = vsyncadd [#allocation4], %s124
      %s127 = sshll.u32 [#allocation7], 4
      %s128 = int_to_ptr.vmem [resolvable:$true] %s127
      %130 = dma.vmem_to_hbm [thread:$0]  %s128, 512, %s2, [#allocation4]
    $region21: #{tpu_custom_call.1} parent=1 // pred_fallthru
      _
    // Predicated region
    $region22: #{tpu_custom_call.1} parent=1 // pred_check
      _
    $region23: #{tpu_custom_call.1} parent=1 // pred_check_branch
      %132 = sbr.rel (0) target = $region25
    $region24: #{tpu_custom_call.1} parent=1 // pred_region
      %133 = dma.done [#allocation4], 512
    $region25: #{tpu_custom_call.1} parent=1 // pred_fallthru
      _
    %134 = vsyncpa [#allocation3], 1
    %135 = vsyncpa [#allocation6], 1
    %136 = vsyncpa [#allocation4], 1

</llo_original>
